<compile_context>
chip_gen: v6e
topology: v6e:2x2x1
jax: 0.10.0
libtpu: 0.0.40
codegen_flags: <defaults>
</compile_context>

<pallas_src>
import jax
import jax.numpy as jnp
from jax.experimental import pallas as pl
from jax.experimental.pallas import tpu as pltpu


def _drop_path_kernel(scale_ref, x_ref, o_ref):
    # scale_ref: (TB, 1) per-sample scale, exactly 0.0 or 1/keep_prob.
    # x_ref / o_ref: (TB, TM) tiles in x's native dtype.
    o_ref[...] = x_ref[...] * scale_ref[...].astype(x_ref.dtype)


def _pick_tiles(B, M, itemsize, target_bytes=4 * 1024 * 1024):
    """Pick (TB, TM) obeying the (8, 128) block rule, ~target_bytes per block."""
    def nbytes(tb, tm):
        return tb * tm * itemsize

    if nbytes(B, M) <= target_bytes:
        return B, M                                   # whole array in one block
    if B >= 8 and nbytes(8, M) <= target_bytes:
        rows = (target_bytes // (M * itemsize) // 8) * 8
        return max(8, rows), M                        # full rows, batch-tiled
    # A slab of 8 full rows is too big (or batch < 8): tile the lane axis too.
    tb = B if B < 8 else 8
    tm = (target_bytes // (tb * itemsize) // 128) * 128
    tm = max(128, min(tm, ((M + 127) // 128) * 128))
    return tb, tm


def drop_path(x, drop_prob, training, *, key=None, seed=0):
    """Pallas DropPath. x: (B, ...). Per-sample stochastic depth."""
    if drop_prob is None or float(drop_prob) == 0.0 or not training:
        return x
    drop_prob = float(drop_prob)
    keep_prob = 1.0 - drop_prob
    if keep_prob <= 0.0:
        # p == 1.0: every sample dropped; avoid 0 * (1/0) = NaN.
        return jnp.zeros_like(x)

    B = x.shape[0]
    if key is None:
        key = jax.random.PRNGKey(seed)
    u = jax.random.uniform(key, (B,), dtype=jnp.float32)
    keep = jnp.floor(keep_prob + u)                       # 0.0 or 1.0 per sample
    scale = (keep * (1.0 / keep_prob)).reshape(B, 1)      # 0.0 or 1/keep_prob
    if jnp.issubdtype(x.dtype, jnp.floating):
        scale = scale.astype(x.dtype)                     # native-dtype multiply

    orig_shape = x.shape
    M = 1
    for d in orig_shape[1:]:
        M *= int(d)
    M = max(M, 1)
    x2d = x.reshape(B, M)

    TB, TM = _pick_tiles(B, M, x2d.dtype.itemsize)
    grid = (pl.cdiv(B, TB), pl.cdiv(M, TM))

    out2d = pl.pallas_call(
        _drop_path_kernel,
        out_shape=jax.ShapeDtypeStruct((B, M), x.dtype),
        grid=grid,
        in_specs=[
            pl.BlockSpec((TB, 1), lambda i, j: (i, 0)),    # per-sample scale
            pl.BlockSpec((TB, TM), lambda i, j: (i, j)),   # x tile
        ],
        out_specs=pl.BlockSpec((TB, TM), lambda i, j: (i, j)),
        compiler_params=pltpu.CompilerParams(
            dimension_semantics=("parallel", "parallel"),  # independent steps;
            vmem_limit_bytes=32 * 1024 * 1024,             # shards across 2 TCs on v7x
        ),
    )(scale, x2d)
    return out2d.reshape(orig_shape)


class DropPath:
    """Drop paths (Stochastic Depth) per sample, Pallas TPU version."""

    def __init__(self, drop_prob=None):
        self.drop_prob = drop_prob
        self.training = True

    def __call__(self, x, seed=0, key=None):
        return drop_path(x, self.drop_prob, self.training, key=key, seed=seed)

    def extra_repr(self):
        return "p={}".format(self.drop_prob)


if __name__ == "__main__":
    key = jax.random.PRNGKey(0)
    B, N, D = 2, 8, 32
    x = jax.random.normal(key, (B, N, D), dtype=jnp.float32)

    mod = DropPath(drop_prob=0.25)

    # training path (stochastic): kernel runs
    y_train = jax.block_until_ready(mod(x, seed=123))

    # sanity: each sample is either all-zero or ~x / keep_prob
    keep_prob = 1.0 - 0.25
    for b in range(B):
        yb = y_train[b]
        is_dropped = bool(jnp.all(yb == 0.0))
        is_kept = bool(jnp.allclose(yb, x[b] / keep_prob, rtol=1e-5, atol=1e-6))
        assert is_dropped or is_kept, "per-sample DropPath semantics violated"

    # eval path: identity
    mod.training = False
    y_eval = jax.block_until_ready(mod(x))
    assert bool(jnp.array_equal(y_eval, x))

    # p == 1.0 edge case: all dropped, no NaNs
    mod_all = DropPath(drop_prob=1.0)
    y_all = jax.block_until_ready(mod_all(x, seed=7))
    assert bool(jnp.all(y_all == 0.0))

    print("KERNEL_OK")
</pallas_src>

<mosaic_0001>
module attributes {stable_mosaic.version = 11 : i64} {
  func.func @_drop_path_kernel(%arg0: i32, %arg1: i32, %arg2: memref<2x1xf32, #tpu.memory_space<vmem>>, %arg3: memref<2x256xf32, #tpu.memory_space<vmem>>, %arg4: memref<2x256xf32, #tpu.memory_space<vmem>>) attributes {dimension_semantics = [#tpu.dimension_semantics<parallel>, #tpu.dimension_semantics<parallel>], iteration_bounds = array<i64: 1, 1>, scalar_prefetch = 0 : i64, scratch_operands = 0 : i64, tpu.core_type = #tpu.core_type<tc>, window_params = [{transform_indices = @transform_0, window_bounds = array<i64: 2, 1>}, {transform_indices = @transform_1, window_bounds = array<i64: 2, 256>}, {transform_indices = @transform_2, window_bounds = array<i64: 2, 256>}]} {
    %c0 = arith.constant 0 : index
    %c0_0 = arith.constant 0 : index
    %0 = vector.load %arg3[%c0, %c0_0] : memref<2x256xf32, #tpu.memory_space<vmem>>, vector<2x256xf32>
    %c0_1 = arith.constant 0 : index
    %c0_2 = arith.constant 0 : index
    %1 = vector.load %arg2[%c0_1, %c0_2] : memref<2x1xf32, #tpu.memory_space<vmem>>, vector<2x1xf32>
    %2 = vector.broadcast %1 : vector<2x1xf32> to vector<2x256xf32>
    %3 = arith.mulf %0, %2 : vector<2x256xf32>
    %c0_3 = arith.constant 0 : index
    %c0_4 = arith.constant 0 : index
    %4 = vector.load %arg4[%c0_3, %c0_4] : memref<2x256xf32, #tpu.memory_space<vmem>>, vector<2x256xf32>
    tpu.vector_store %arg4[%c0_3, %c0_4], %3 {strides = array<i32>} : memref<2x256xf32, #tpu.memory_space<vmem>>, vector<2x256xf32>,
    return
  }
  func.func @transform_0(%arg0: i32, %arg1: i32) -> (i32, i32) {
    %c0_i32 = arith.constant 0 : i32
    %c0_i32_0 = arith.constant 0 : i32
    return %arg0, %c0_i32 : i32, i32
  }
  func.func @transform_1(%arg0: i32, %arg1: i32) -> (i32, i32) {
    %c0_i32 = arith.constant 0 : i32
    return %arg0, %arg1 : i32, i32
  }
  func.func @transform_2(%arg0: i32, %arg1: i32) -> (i32, i32) {
    %c0_i32 = arith.constant 0 : i32
    return %arg0, %arg1 : i32, i32
  }
}

</mosaic_0001>

<llo_original>
// kernel: tpu_custom_call.1
$region0: #{tpu_custom_call.1}
  #allocation0 [shape = 'u32[]', space=smem, size = 0x4, offset = 0x4, fixed_abs, tag = 'smem constant byte address 0x4 - core index']
  #allocation1 [shape = 'u32[144,128]{1,0:T(1,128)}', space=vmem, size = 0x12000, scoped, tag = 'internal scratch']
  %s0 = inlined_call_operand.vmem [shape: f32[2,1], index: 0, kind: input, shape index: {}]
  %s1 = inlined_call_operand.vmem [shape: f32[2,256], index: 1, kind: input, shape index: {}]
  %s2 = inlined_call_operand.hbm [shape: f32[2,256], index: 2, kind: output, shape index: {}]
  %s3 = sld [smem:[#allocation0]]
  $region18: #{tpu_custom_call.1} parent=0
    _
  %s5 = ssub.s32 1, %s3
  %s6 = scalar_select 0, %s5, %s3
  $region1: #{tpu_custom_call.1} parent=0
    #allocation2 [shape = 'u8[2048]{0}', space=vmem, size = 0x800, scoped, tag = 'output window, operand 0, single buffered']
    #allocation3 [shape = 's32[1]{0}', space=sflag, size = 0x4, scoped, tag = 'scoped memory for tpu_custom_call.1']
    %7 = vsyncpa [#allocation3], 0
    // Predicated region
    $region2: #{tpu_custom_call.1} parent=1 // pred_check
      _
    $region3: #{tpu_custom_call.1} parent=1 // pred_check_branch
      %9 = sbr.rel (0) target = $region5
    $region4: #{tpu_custom_call.1} parent=1 // pred_region
      _
    $region5: #{tpu_custom_call.1} parent=1 // pred_fallthru
      _
    // Predicated region
    $region6: #{tpu_custom_call.1} parent=1 // pred_check
      _
    $region7: #{tpu_custom_call.1} parent=1 // pred_check_branch
      %11 = sbr.rel (0) target = $region9
    $region8: #{tpu_custom_call.1} parent=1 // pred_region
      _
    $region9: #{tpu_custom_call.1} parent=1 // pred_fallthru
      _
    %v12 = vld [vmem:[%s1] sm:$0xf]
    %v13 = vld [vmem:[%s0] sm:$0x3]
    %15 = vset.pattern.permute.xlu0 0
    %16 = vperm.xlu0 %15, %v13
    %v17 = vpop.permute.xlu0 %16
    %v19 = vunpack.c.l.s4 269488144
    %v20 = vunpack.c.0.s8 %v19
    %v21 = vlaneseq
    %v22 = vshrl.u32 %v21, 7
    %v23 = vsub.s32 %v20, %v22
    %v24 = vrot.slane %v17, %v23
    %v26 = vmul.f32 %v12, %v24
    %27 = vst [vmem:[#allocation2] sm:$0xf] %v26
    // Predicated region
    $region10: #{tpu_custom_call.1} parent=1 // pred_check
      _
    $region11: #{tpu_custom_call.1} parent=1 // pred_check_branch
      %29 = sbr.rel (0) target = $region13
    $region12: #{tpu_custom_call.1} parent=1 // pred_region
      %s31 = ssub.s32 64, 64
      %32 = vsyncadd [#allocation3], %s31
      %s34 = sshll.u32 [#allocation2], 4
      %s35 = int_to_ptr.vmem [resolvable:$true] %s34
      %37 = dma.vmem_to_hbm [thread:$0]  %s35, 64, %s2, [#allocation3]
    $region13: #{tpu_custom_call.1} parent=1 // pred_fallthru
      _
    // Predicated region
    $region14: #{tpu_custom_call.1} parent=1 // pred_check
      _
    $region15: #{tpu_custom_call.1} parent=1 // pred_check_branch
      %39 = sbr.rel (0) target = $region17
    $region16: #{tpu_custom_call.1} parent=1 // pred_region
      %40 = dma.done [#allocation3], 64
    $region17: #{tpu_custom_call.1} parent=1 // pred_fallthru
      _
    %41 = vsyncpa [#allocation3], 1

</llo_original>
